<compile_context>
chip_gen: v7x
topology: tpu7x:2x2x1
jax: 0.10.0
libtpu: 0.0.40
codegen_flags: <defaults>
</compile_context>

<pallas_src>
import functools

import jax
import jax.numpy as jnp
from jax.experimental import pallas as pl
from jax.experimental.pallas import tpu as pltpu

LANE = 128  # lane width: pad only the output/last dim to this


def _round_up(n: int, m: int) -> int:
    return ((n + m - 1) // m) * m


# ----------------------------------------------------------------------------
# Weight preparation (done ONCE -- parameters are static).
# Only the H (output / lane) dim is padded to 128.  Contraction dims stay at
# their natural sizes (16 / 32 here), avoiding the 2.3x zero-byte weight DMA
# of the old K->128 pad.  operand_dtype=bf16 enables the v6e/v7x MXU fast
# path (f32 accumulation is kept in the kernel).
# ----------------------------------------------------------------------------
def prepare_rnn_cell_weights(wxh, whh, bh, operand_dtype=jnp.float32):
    input_size, hidden_size = wxh.shape
    h_pad = _round_up(hidden_size, LANE)
    wxh_p = jnp.pad(wxh, ((0, 0), (0, h_pad - hidden_size))).astype(operand_dtype)
    whh_p = jnp.pad(whh, ((0, 0), (0, h_pad - hidden_size))).astype(operand_dtype)
    bh_p = jnp.pad(bh, (0, h_pad - hidden_size)).astype(jnp.float32)[None, :]
    return wxh_p, whh_p, bh_p


def prepare_rnn_seq_weights(wxh, whh, bh, operand_dtype=jnp.float32):
    # Sequence version carries h in a padded (B, H_pad) scratch, so Whh's
    # contraction dim must also be padded (extra rows are zeros -> exact).
    input_size, hidden_size = wxh.shape
    h_pad = _round_up(hidden_size, LANE)
    wxh_p = jnp.pad(wxh, ((0, 0), (0, h_pad - hidden_size))).astype(operand_dtype)
    whh_p = jnp.pad(
        whh, ((0, h_pad - hidden_size), (0, h_pad - hidden_size))
    ).astype(operand_dtype)
    bh_p = jnp.pad(bh, (0, h_pad - hidden_size)).astype(jnp.float32)[None, :]
    return wxh_p, whh_p, bh_p


# ----------------------------------------------------------------------------
# Single-cell kernel: everything in-kernel, no wrapper-side activation ops.
# ----------------------------------------------------------------------------
def rnn_cell_kernel(x_ref, h_ref, wxh_ref, whh_ref, bh_ref, out_ref):
    cdt = wxh_ref.dtype  # MXU operand dtype (f32 or bf16); accumulate in f32.
    acc = jnp.dot(x_ref[...].astype(cdt), wxh_ref[...],
                  preferred_element_type=jnp.float32)
    acc = acc + jnp.dot(h_ref[...].astype(cdt), whh_ref[...],
                        preferred_element_type=jnp.float32)
    acc = acc + bh_ref[...]                       # bias stays f32 (VPU add)
    out_ref[...] = jnp.tanh(acc).astype(out_ref.dtype)   # tanh on EUP, f32


@functools.partial(jax.jit, static_argnames=("hidden_size",))
def rnn_cell_forward(x, h_prev, wxh_p, whh_p, bh_p, *, hidden_size):
    b, input_size = x.shape
    h_pad = wxh_p.shape[1]
    vmem = pl.BlockSpec(memory_space=pltpu.MemorySpace.VMEM)

    flops = 2 * b * (input_size + h_prev.shape[1]) * h_pad
    bytes_accessed = (
        x.size * x.dtype.itemsize
        + h_prev.size * h_prev.dtype.itemsize
        + wxh_p.size * wxh_p.dtype.itemsize
        + whh_p.size * whh_p.dtype.itemsize
        + bh_p.size * bh_p.dtype.itemsize
        + b * h_pad * 4
    )

    out = pl.pallas_call(
        rnn_cell_kernel,
        out_shape=jax.ShapeDtypeStruct((b, h_pad), jnp.float32),
        in_specs=[vmem] * 5,
        out_specs=vmem,
        cost_estimate=pl.CostEstimate(
            flops=flops, transcendentals=b * h_pad, bytes_accessed=bytes_accessed
        ),
    )(x, h_prev, wxh_p, whh_p, bh_p)
    # Lane-dense (H_pad=128) output keeps stores unmasked; the only remaining
    # wrapper op is this 1 KiB slice back to the logical width.
    return out[:, :hidden_size]


# ----------------------------------------------------------------------------
# Sequence-fused kernel: grid=(T,) with weights VMEM-resident (constant
# index_map -> DMA'd once), h carried in VMEM scratch, x/out streamed.
# ----------------------------------------------------------------------------
def rnn_seq_kernel(x_ref, h0_ref, wxh_ref, whh_ref, bh_ref, out_ref, h_scr):
    t = pl.program_id(0)

    @pl.when(t == 0)
    def _():
        h_scr[...] = h0_ref[...]

    cdt = wxh_ref.dtype
    acc = jnp.dot(x_ref[...].astype(cdt), wxh_ref[...],
                  preferred_element_type=jnp.float32)
    acc = acc + jnp.dot(h_scr[...].astype(cdt), whh_ref[...],
                        preferred_element_type=jnp.float32)
    acc = acc + bh_ref[...]
    h_new = jnp.tanh(acc)
    h_scr[...] = h_new
    out_ref[...] = h_new.astype(out_ref.dtype)


@functools.partial(jax.jit, static_argnames=("hidden_size",))
def rnn_sequence_forward(xs, h0, wxh_p, whh_p, bh_p, *, hidden_size):
    t_len, b, input_size = xs.shape
    h_pad = whh_p.shape[1]
    # One tiny pad per *sequence* (amortized over T steps).
    h0_p = jnp.pad(h0, ((0, 0), (0, h_pad - hidden_size)))

    out = pl.pallas_call(
        rnn_seq_kernel,
        out_shape=jax.ShapeDtypeStruct((t_len, b, h_pad), jnp.float32),
        grid=(t_len,),
        in_specs=[
            pl.BlockSpec((None, b, input_size), lambda t: (t, 0, 0)),  # x streamed
            pl.BlockSpec((b, h_pad), lambda t: (0, 0)),                # h0 resident
            pl.BlockSpec((input_size, h_pad), lambda t: (0, 0)),       # weights resident
            pl.BlockSpec((h_pad, h_pad), lambda t: (0, 0)),
            pl.BlockSpec((1, h_pad), lambda t: (0, 0)),
        ],
        out_specs=pl.BlockSpec((None, b, h_pad), lambda t: (t, 0, 0)),
        scratch_shapes=[pltpu.VMEM((b, h_pad), jnp.float32)],          # carried h
        compiler_params=pltpu.CompilerParams(
            dimension_semantics=("arbitrary",)  # sequential dependence through h
        ),
    )(xs, h0_p, wxh_p, whh_p, bh_p)
    return out[:, :, :hidden_size]


if __name__ == "__main__":
    batch, input_size, hidden_size, seq_len = 8, 16, 32, 8

    key = jax.random.PRNGKey(0)
    k_x, k_h, k_wxh, k_whh, k_bh, k_xs = jax.random.split(key, 6)

    x = jax.random.normal(k_x, (batch, input_size), dtype=jnp.float32)
    h_prev = jax.random.normal(k_h, (batch, hidden_size), dtype=jnp.float32)
    wxh = jax.random.normal(k_wxh, (input_size, hidden_size), dtype=jnp.float32)
    whh = jax.random.normal(k_whh, (hidden_size, hidden_size), dtype=jnp.float32)
    # Non-zero bias so the bias path is actually exercised.
    bh = 0.1 * jax.random.normal(k_bh, (hidden_size,), dtype=jnp.float32)

    h_ref = jnp.tanh(x @ wxh + h_prev @ whh + bh)

    # --- single cell, f32 MXU operands (matches PyTorch numerics) ---
    wxh_p, whh_p, bh_p = prepare_rnn_cell_weights(wxh, whh, bh)
    h = rnn_cell_forward(x, h_prev, wxh_p, whh_p, bh_p, hidden_size=hidden_size)
    h = jax.block_until_ready(h)
    assert h.shape == (batch, hidden_size)
    assert jnp.allclose(h, h_ref, atol=1e-4, rtol=1e-4)

    # --- single cell, bf16 MXU operands / f32 accumulation (v6e/v7x path) ---
    wxh_b, whh_b, bh_b = prepare_rnn_cell_weights(
        wxh, whh, bh, operand_dtype=jnp.bfloat16
    )
    h_bf16 = jax.block_until_ready(
        rnn_cell_forward(x, h_prev, wxh_b, whh_b, bh_b, hidden_size=hidden_size)
    )
    assert h_bf16.shape == (batch, hidden_size)
    assert jnp.allclose(h_bf16, h_ref, atol=2.5e-1)  # bf16 operand rounding

    # --- sequence-fused variant: T steps inside one pallas_call ---
    xs = jax.random.normal(k_xs, (seq_len, batch, input_size), dtype=jnp.float32)
    wxh_s, whh_s, bh_s = prepare_rnn_seq_weights(wxh, whh, bh)
    hs = jax.block_until_ready(
        rnn_sequence_forward(xs, h_prev, wxh_s, whh_s, bh_s, hidden_size=hidden_size)
    )

    def scan_step(h_carry, x_t):
        h_new = jnp.tanh(x_t @ wxh + h_carry @ whh + bh)
        return h_new, h_new

    _, hs_ref = jax.lax.scan(scan_step, h_prev, xs)
    assert hs.shape == (seq_len, batch, hidden_size)
    assert jnp.allclose(hs, hs_ref, atol=1e-3, rtol=1e-3)

    print("KERNEL_OK")
</pallas_src>

<mosaic_0001>
module attributes {stable_mosaic.version = 11 : i64} {
  func.func @rnn_cell_kernel(%arg0: memref<8x16xf32, #tpu.memory_space<vmem>>, %arg1: memref<8x32xf32, #tpu.memory_space<vmem>>, %arg2: memref<16x128xf32, #tpu.memory_space<vmem>>, %arg3: memref<32x128xf32, #tpu.memory_space<vmem>>, %arg4: memref<1x128xf32, #tpu.memory_space<vmem>>, %arg5: memref<8x128xf32, #tpu.memory_space<vmem>>) attributes {dimension_semantics = [], scalar_prefetch = 0 : i64, scratch_operands = 0 : i64, tpu.core_type = #tpu.core_type<tc>} {
    %c0 = arith.constant 0 : index
    %c0_0 = arith.constant 0 : index
    %0 = vector.load %arg0[%c0, %c0_0] : memref<8x16xf32, #tpu.memory_space<vmem>>, vector<8x16xf32>
    %c0_1 = arith.constant 0 : index
    %c0_2 = arith.constant 0 : index
    %1 = vector.load %arg2[%c0_1, %c0_2] : memref<16x128xf32, #tpu.memory_space<vmem>>, vector<16x128xf32>
    %cst = arith.constant dense<0.000000e+00> : vector<8x128xf32>
    %2 = tpu.matmul %0, %1, %cst {dimension_numbers = #tpu.dot_dimension_numbers<[1], [0], [0], [1], [0, 0, 1, 1], [], []>} : vector<8x16xf32>, vector<16x128xf32>, vector<8x128xf32> -> vector<8x128xf32>
    %c0_3 = arith.constant 0 : index
    %c0_4 = arith.constant 0 : index
    %3 = vector.load %arg1[%c0_3, %c0_4] : memref<8x32xf32, #tpu.memory_space<vmem>>, vector<8x32xf32>
    %c0_5 = arith.constant 0 : index
    %c0_6 = arith.constant 0 : index
    %4 = vector.load %arg3[%c0_5, %c0_6] : memref<32x128xf32, #tpu.memory_space<vmem>>, vector<32x128xf32>
    %cst_7 = arith.constant dense<0.000000e+00> : vector<8x128xf32>
    %5 = tpu.matmul %3, %4, %cst_7 {dimension_numbers = #tpu.dot_dimension_numbers<[1], [0], [0], [1], [0, 0, 1, 1], [], []>} : vector<8x32xf32>, vector<32x128xf32>, vector<8x128xf32> -> vector<8x128xf32>
    %6 = arith.addf %2, %5 : vector<8x128xf32>
    %c0_8 = arith.constant 0 : index
    %c0_9 = arith.constant 0 : index
    %7 = vector.load %arg4[%c0_8, %c0_9] : memref<1x128xf32, #tpu.memory_space<vmem>>, vector<1x128xf32>
    %8 = vector.broadcast %7 : vector<1x128xf32> to vector<8x128xf32>
    %9 = arith.addf %6, %8 : vector<8x128xf32>
    %10 = math.tanh %9 : vector<8x128xf32>
    %c0_10 = arith.constant 0 : index
    %c0_11 = arith.constant 0 : index
    %11 = vector.load %arg5[%c0_10, %c0_11] : memref<8x128xf32, #tpu.memory_space<vmem>>, vector<8x128xf32>
    tpu.vector_store %arg5[%c0_10, %c0_11], %10 {strides = array<i32>} : memref<8x128xf32, #tpu.memory_space<vmem>>, vector<8x128xf32>,
    return
  }
}

</mosaic_0001>

<llo_original>
// kernel: rnn_cell_forward.1
$region0: #{rnn_cell_forward.1}
  #allocation0 [shape = 'u32[]', space=smem, size = 0x4, offset = 0x4, fixed_abs, tag = 'smem constant byte address 0x4 - core index']
  #allocation1 [shape = 'u32[144,128]{1,0:T(1,128)}', space=vmem, size = 0x12000, scoped, tag = 'internal scratch']
  %s0 = inlined_call_operand.hbm [shape: f32[8,16], index: 0, kind: input, shape index: {}]
  %s1 = inlined_call_operand.hbm [shape: f32[8,32], index: 1, kind: input, shape index: {}]
  %s2 = inlined_call_operand.hbm [shape: f32[16,128], index: 2, kind: input, shape index: {}]
  %s3 = inlined_call_operand.hbm [shape: f32[32,128], index: 3, kind: input, shape index: {}]
  %s4 = inlined_call_operand.vmem [shape: f32[1,128], index: 4, kind: input, shape index: {}]
  %s5 = inlined_call_operand.hbm [shape: f32[8,128], index: 5, kind: output, shape index: {}]
  %s6 = sld [smem:[#allocation0]]
  $region46: #{rnn_cell_forward.1} parent=0
    _
  %s8 = ssub.s32 1, %s6
  %s9 = scalar_select 0, %s8, %s6
  $region1: #{rnn_cell_forward.1} parent=0
    #allocation2 [shape = 'u8[4096]{0}', space=vmem, size = 0x1000, scoped, tag = 'input window, operand 0, single buffered']
    #allocation3 [shape = 's32[1]{0}', space=sflag, size = 0x4, scoped, tag = 'scoped memory for rnn_cell_forward.1']
    #allocation4 [shape = 's32[1]{0}', space=sflag, size = 0x4, scoped, tag = 'scoped memory for rnn_cell_forward.1']
    #allocation5 [shape = 'u8[4096]{0}', space=vmem, size = 0x1000, scoped, tag = 'input window, operand 1, single buffered']
    #allocation6 [shape = 's32[1]{0}', space=sflag, size = 0x4, scoped, tag = 'scoped memory for rnn_cell_forward.1']
    #allocation7 [shape = 'u8[8192]{0}', space=vmem, size = 0x2000, scoped, tag = 'input window, operand 2, single buffered']
    #allocation8 [shape = 'u8[16384]{0}', space=vmem, size = 0x4000, scoped, tag = 'input window, operand 3, single buffered']
    #allocation9 [shape = 's32[1]{0}', space=sflag, size = 0x4, scoped, tag = 'scoped memory for rnn_cell_forward.1']
    #allocation10 [shape = 'u8[4096]{0}', space=vmem, size = 0x1000, scoped, tag = 'output window, operand 0, single buffered']
    %10 = vsyncpa [#allocation3], 0
    %11 = vsyncpa [#allocation6], 0
    %12 = vsyncpa [#allocation9], 0
    %13 = vsyncpa [#allocation4], 0
    // Predicated region
    $region2: #{rnn_cell_forward.1} parent=1 // pred_check
      _
    $region3: #{rnn_cell_forward.1} parent=1 // pred_check_branch
      %15 = sbr.rel (0) target = $region5
    $region4: #{rnn_cell_forward.1} parent=1 // pred_region
      %s17 = ssub.s32 128, 128
      %18 = vsyncadd [#allocation3], %s17
      %s20 = sshll.u32 [#allocation2], 4
      %s21 = int_to_ptr.vmem [resolvable:$true] %s20
      %23 = dma.hbm_to_vmem [thread:$0]  %s0, 128, %s21, [#allocation3]
    $region5: #{rnn_cell_forward.1} parent=1 // pred_fallthru
      _
    // Predicated region
    $region6: #{rnn_cell_forward.1} parent=1 // pred_check
      _
    $region7: #{rnn_cell_forward.1} parent=1 // pred_check_branch
      %25 = sbr.rel (0) target = $region9
    $region8: #{rnn_cell_forward.1} parent=1 // pred_region
      %s27 = ssub.s32 128, 128
      %28 = vsyncadd [#allocation6], %s27
      %s30 = sshll.u32 [#allocation5], 4
      %s31 = int_to_ptr.vmem [resolvable:$true] %s30
      %33 = dma.hbm_to_vmem [thread:$0]  %s1, 128, %s31, [#allocation6]
    $region9: #{rnn_cell_forward.1} parent=1 // pred_fallthru
      _
    // Predicated region
    $region10: #{rnn_cell_forward.1} parent=1 // pred_check
      _
    $region11: #{rnn_cell_forward.1} parent=1 // pred_check_branch
      %35 = sbr.rel (0) target = $region13
    $region12: #{rnn_cell_forward.1} parent=1 // pred_region
      %s37 = ssub.s32 256, 256
      %38 = vsyncadd [#allocation6], %s37
      %s39 = sshll.u32 [#allocation7], 4
      %s40 = int_to_ptr.vmem [resolvable:$true] %s39
      %45 = dma.hbm_to_vmem [thread:$0]  %s2, 256, %s40, [#allocation6], 128, 128, 8
    $region13: #{rnn_cell_forward.1} parent=1 // pred_fallthru
      _
    // Predicated region
    $region14: #{rnn_cell_forward.1} parent=1 // pred_check
      _
    $region15: #{rnn_cell_forward.1} parent=1 // pred_check_branch
      %47 = sbr.rel (0) target = $region17
    $region16: #{rnn_cell_forward.1} parent=1 // pred_region
      %s49 = ssub.s32 512, 512
      %50 = vsyncadd [#allocation9], %s49
      %s51 = sshll.u32 [#allocation8], 4
      %s52 = int_to_ptr.vmem [resolvable:$true] %s51
      %57 = dma.hbm_to_vmem [thread:$0]  %s3, 512, %s52, [#allocation9], 128, 128, 8
    $region17: #{rnn_cell_forward.1} parent=1 // pred_fallthru
      _
    // Predicated region
    $region18: #{rnn_cell_forward.1} parent=1 // pred_check
      _
    $region19: #{rnn_cell_forward.1} parent=1 // pred_check_branch
      %59 = sbr.rel (0) target = $region21
    $region20: #{rnn_cell_forward.1} parent=1 // pred_region
      _
    $region21: #{rnn_cell_forward.1} parent=1 // pred_fallthru
      _
    // Predicated region
    $region22: #{rnn_cell_forward.1} parent=1 // pred_check
      _
    $region23: #{rnn_cell_forward.1} parent=1 // pred_check_branch
      %61 = sbr.rel (0) target = $region25
    $region24: #{rnn_cell_forward.1} parent=1 // pred_region
      %62 = dma.done [#allocation3], 128
    $region25: #{rnn_cell_forward.1} parent=1 // pred_fallthru
      _
    // Predicated region
    $region26: #{rnn_cell_forward.1} parent=1 // pred_check
      _
    $region27: #{rnn_cell_forward.1} parent=1 // pred_check_branch
      %64 = sbr.rel (0) target = $region29
    $region28: #{rnn_cell_forward.1} parent=1 // pred_region
      %65 = dma.done [#allocation6], 128
    $region29: #{rnn_cell_forward.1} parent=1 // pred_fallthru
      _
    // Predicated region
    $region30: #{rnn_cell_forward.1} parent=1 // pred_check
      _
    $region31: #{rnn_cell_forward.1} parent=1 // pred_check_branch
      %67 = sbr.rel (0) target = $region33
    $region32: #{rnn_cell_forward.1} parent=1 // pred_region
      %68 = dma.done [#allocation6], 256
    $region33: #{rnn_cell_forward.1} parent=1 // pred_fallthru
      _
    // Predicated region
    $region34: #{rnn_cell_forward.1} parent=1 // pred_check
      _
    $region35: #{rnn_cell_forward.1} parent=1 // pred_check_branch
      %70 = sbr.rel (0) target = $region37
    $region36: #{rnn_cell_forward.1} parent=1 // pred_region
      %71 = dma.done [#allocation9], 512
    $region37: #{rnn_cell_forward.1} parent=1 // pred_fallthru
      _
    %v72 = vld [vmem:[#allocation2] sm:$0xff]
    %v73 = vld [vmem:[#allocation7] sm:$0xff]
    %v74 = vld [vmem:[#allocation7 + $0x8] sm:$0xff]
    %v75 = vld [vmem:[#allocation5] sm:$0xff]
    %v76 = vld [vmem:[#allocation8] sm:$0xff]
    %v77 = vld [vmem:[#allocation8 + $0x8] sm:$0xff]
    %v78 = vld [vmem:[#allocation8 + $0x10] sm:$0xff]
    %v79 = vld [vmem:[#allocation8 + $0x18] sm:$0xff]
    %vm80 = vcmask 261120
    %v82 = vsel %vm80, %v75, 0
    %84 = vmatprep.subr.mxu0 0.0
    %85 = vmatpush1.msra.mxu0 %v76
    %86 = vmatprep.subr.mxu0 0.0
    %87 = vmatpush1.msra.mxu0 %v77
    %88 = vmatprep.subr.mxu0 0.0
    %89 = vmatpush1.msra.mxu0 %v78
    %90 = vmatprep.subr.mxu0 0.0
    %91 = vmatpush1.msra.mxu0 %v79
    %92 = vmatprep.subr.mxu0 0.0
    %93 = vmatpush1.msra.mxu0 0.0
    %94 = vmatprep.subr.mxu0 0.0
    %95 = vmatpush1.msra.mxu0 0.0
    %96 = vmatprep.subr.mxu0 0.0
    %97 = vmatpush1.msra.mxu0 0.0
    %98 = vmatprep.subr.mxu0 0.0
    %99 = vmatpush1.msra.mxu0 0.0
    %100 = vmatprep.subr.mxu0 0.0
    %101 = vmatpush1.msra.mxu0 0.0
    %102 = vmatprep.subr.mxu0 0.0
    %103 = vmatpush1.msra.mxu0 0.0
    %104 = vmatprep.subr.mxu0 0.0
    %105 = vmatpush1.msra.mxu0 0.0
    %106 = vmatprep.subr.mxu0 0.0
    %107 = vmatpush1.msra.mxu0 0.0
    %108 = vmatprep.subr.mxu0 0.0
    %109 = vmatpush1.msra.mxu0 0.0
    %110 = vmatprep.subr.mxu0 0.0
    %111 = vmatpush1.msra.mxu0 0.0
    %112 = vmatprep.subr.mxu0 0.0
    %113 = vmatpush1.msra.mxu0 0.0
    %114 = vmatprep.subr.mxu0 0.0
    %115 = vmatpush1.msra.mxu0 0.0
    %116 = vmatprep.subr.mxu0 0.0
    %117 = vmatpush1.msra.mxu0 0.0
    %118 = vmatprep.subr.mxu0 0.0
    %119 = vmatpush1.msra.mxu0 0.0
    %120 = vmatprep.subr.mxu0 0.0
    %121 = vmatpush1.msra.mxu0 0.0
    %122 = vmatprep.subr.mxu0 0.0
    %123 = vmatpush1.msra.mxu0 0.0
    %124 = vmatprep.subr.mxu0 0.0
    %125 = vmatpush1.msra.mxu0 0.0
    %126 = vmatprep.subr.mxu0 0.0
    %127 = vmatpush1.msra.mxu0 0.0
    %128 = vmatprep.subr.mxu0 0.0
    %129 = vmatpush1.msra.mxu0 0.0
    %130 = vmatprep.subr.mxu0 0.0
    %131 = vmatpush1.msra.mxu0 0.0
    %132 = vmatprep.subr.mxu0 0.0
    %133 = vmatpush1.msra.mxu0 0.0
    %134 = vmatprep.subr.mxu0 0.0
    %135 = vmatpush1.msra.mxu0 0.0
    %136 = vmatprep.subr.mxu0 0.0
    %137 = vmatpush1.msra.mxu0 0.0
    %138 = vmatprep.subr.mxu0 0.0
    %139 = vmatpush1.msra.mxu0 0.0
    %140 = vmatprep.subr.mxu0 0.0
    %141 = vmatpush1.msra.mxu0 0.0
    %142 = vmatprep.subr.mxu0 0.0
    %143 = vmatpush1.msra.mxu0 0.0
    %144 = vmatprep.subr.mxu0 0.0
    %145 = vmatpush1.msra.mxu0 0.0
    %146 = vmatprep.subr.mxu0 0.0
    %147 = vmatpush1.msra.mxu0 0.0
    %148 = vmatprep.mubr.f32.mxu0 0.0
    %149 = vmatmul.mubr.f32.gmra.mrb[0].mxu0 %v82
    %v150 = vpop.f32.mrb[0].mxu0
    %v151 = vadd.f32 0.0, %v150
    %v152 = vpop.f32.mrb[0].mxu0
    %153 = vdwg.mxu0
    %vm154 = vcmask 130048
    %v156 = vsel %vm154, %v72, 0
    %158 = vmatprep.subr.mxu0 0.0
    %159 = vmatpush1.msra.mxu0 %v73
    %160 = vmatprep.subr.mxu0 0.0
    %161 = vmatpush1.msra.mxu0 %v74
    %162 = vmatprep.subr.mxu0 0.0
    %163 = vmatpush1.msra.mxu0 0.0
    %164 = vmatprep.subr.mxu0 0.0
    %165 = vmatpush1.msra.mxu0 0.0
    %166 = vmatprep.subr.mxu0 0.0
    %167 = vmatpush1.msra.mxu0 0.0
    %168 = vmatprep.subr.mxu0 0.0
    %169 = vmatpush1.msra.mxu0 0.0
    %170 = vmatprep.subr.mxu0 0.0
    %171 = vmatpush1.msra.mxu0 0.0
    %172 = vmatprep.subr.mxu0 0.0
    %173 = vmatpush1.msra.mxu0 0.0
    %174 = vmatprep.subr.mxu0 0.0
    %175 = vmatpush1.msra.mxu0 0.0
    %176 = vmatprep.subr.mxu0 0.0
    %177 = vmatpush1.msra.mxu0 0.0
    %178 = vmatprep.subr.mxu0 0.0
    %179 = vmatpush1.msra.mxu0 0.0
    %180 = vmatprep.subr.mxu0 0.0
    %181 = vmatpush1.msra.mxu0 0.0
    %182 = vmatprep.subr.mxu0 0.0
    %183 = vmatpush1.msra.mxu0 0.0
    %184 = vmatprep.subr.mxu0 0.0
    %185 = vmatpush1.msra.mxu0 0.0
    %186 = vmatprep.subr.mxu0 0.0
    %187 = vmatpush1.msra.mxu0 0.0
    %188 = vmatprep.subr.mxu0 0.0
    %189 = vmatpush1.msra.mxu0 0.0
    %190 = vmatprep.subr.mxu0 0.0
    %191 = vmatpush1.msra.mxu0 0.0
    %192 = vmatprep.subr.mxu0 0.0
    %193 = vmatpush1.msra.mxu0 0.0
    %194 = vmatprep.subr.mxu0 0.0
    %195 = vmatpush1.msra.mxu0 0.0
    %196 = vmatprep.subr.mxu0 0.0
    %197 = vmatpush1.msra.mxu0 0.0
    %198 = vmatprep.subr.mxu0 0.0
    %199 = vmatpush1.msra.mxu0 0.0
    %200 = vmatprep.subr.mxu0 0.0
    %201 = vmatpush1.msra.mxu0 0.0
    %202 = vmatprep.subr.mxu0 0.0
    %203 = vmatpush1.msra.mxu0 0.0
    %204 = vmatprep.subr.mxu0 0.0
    %205 = vmatpush1.msra.mxu0 0.0
    %206 = vmatprep.subr.mxu0 0.0
    %207 = vmatpush1.msra.mxu0 0.0
    %208 = vmatprep.subr.mxu0 0.0
    %209 = vmatpush1.msra.mxu0 0.0
    %210 = vmatprep.subr.mxu0 0.0
    %211 = vmatpush1.msra.mxu0 0.0
    %212 = vmatprep.subr.mxu0 0.0
    %213 = vmatpush1.msra.mxu0 0.0
    %214 = vmatprep.subr.mxu0 0.0
    %215 = vmatpush1.msra.mxu0 0.0
    %216 = vmatprep.subr.mxu0 0.0
    %217 = vmatpush1.msra.mxu0 0.0
    %218 = vmatprep.subr.mxu0 0.0
    %219 = vmatpush1.msra.mxu0 0.0
    %220 = vmatprep.subr.mxu0 0.0
    %221 = vmatpush1.msra.mxu0 0.0
    %222 = vmatprep.mubr.f32.mxu0 0.0
    %223 = vmatmul.mubr.f32.gmra.mrb[0].mxu0 %v156
    %v224 = vpop.f32.mrb[0].mxu0
    %v225 = vadd.f32 %v151, %v224
    %v226 = vpop.f32.mrb[0].mxu0
    %227 = vdwg.mxu0
    %v228 = vld [vmem:[%s4] sm:$0x1]
    %v230 = vlaneseq
    %v231 = vshrl.u32 %v230, 7
    %v232 = vsub.s32 0, %v231
    %v233 = vrot.slane %v228, %v232
    %v235 = vadd.f32 %v225, %v233
    %v236 = vtanh.pop %v235
    %237 = vst [vmem:[#allocation10] sm:$0xff] %v236
    // Predicated region
    $region38: #{rnn_cell_forward.1} parent=1 // pred_check
      _
    $region39: #{rnn_cell_forward.1} parent=1 // pred_check_branch
      %239 = sbr.rel (0) target = $region41
    $region40: #{rnn_cell_forward.1} parent=1 // pred_region
      %s241 = ssub.s32 128, 128
      %242 = vsyncadd [#allocation4], %s241
      %s244 = sshll.u32 [#allocation10], 4
      %s245 = int_to_ptr.vmem [resolvable:$true] %s244
      %247 = dma.vmem_to_hbm [thread:$0]  %s245, 128, %s5, [#allocation4]
    $region41: #{rnn_cell_forward.1} parent=1 // pred_fallthru
      _
    // Predicated region
    $region42: #{rnn_cell_forward.1} parent=1 // pred_check
      _
    $region43: #{rnn_cell_forward.1} parent=1 // pred_check_branch
      %249 = sbr.rel (0) target = $region45
    $region44: #{rnn_cell_forward.1} parent=1 // pred_region
      %250 = dma.done [#allocation4], 128
    $region45: #{rnn_cell_forward.1} parent=1 // pred_fallthru
      _
    %251 = vsyncpa [#allocation3], 1
    %252 = vsyncpa [#allocation6], 1
    %253 = vsyncpa [#allocation9], 1
    %254 = vsyncpa [#allocation4], 1

</llo_original>
